<compile_context>
chip_gen: v5e
topology: v5e:2x2
jax: 0.10.0
libtpu: 0.0.40
codegen_flags: <defaults>
</compile_context>

<pallas_src>
from functools import partial

import jax
import jax.numpy as jnp
from jax.experimental import pallas as pl
from jax.experimental.pallas import tpu as pltpu


HIDDEN = 10          # hidden_neurons
OUT = 8              # number of epidemiological params
TB_MAX = 512         # max lane tile (multiple of 128); 1024 risks vreg spill

# Packed-parameter layout: P is (16, 128) float32 (one (8,128)-aligned buffer).
#   P[0:HIDDEN, COL_W1]                 = w1[:, 0]   (torch layout (out,in)=(10,1))
#   P[0:HIDDEN, COL_B1]                 = b1
#   P[0:HIDDEN, COL_W2:COL_W2+HIDDEN]   = w2          (torch layout (10,10))
#   P[0:HIDDEN, COL_B2]                 = b2
#   P[0:OUT,    COL_W3:COL_W3+HIDDEN]   = w3          (torch layout (8,10))
#   P[0:OUT,    COL_B3]                 = b3
# Invariant: all unused rows/cols of P are ZERO (rows >= HIDDEN of layers 1/2
# produce tanh(0)=0 and are never summed into layer 3).
PACK_ROWS, PACK_COLS = 16, 128
COL_W1 = 0
COL_B1 = 1
COL_W2 = 2
COL_B2 = COL_W2 + HIDDEN          # 12
COL_W3 = COL_B2 + 1               # 13
COL_B3 = COL_W3 + HIDDEN          # 23


def betanet_kernel(t_ref, p_ref, o_ref, *, apply_sigmoid):
    """One lane-tile of the MLP, feature-major, all on the VPU/EUP.

    t_ref: (1, TB)   time values along lanes
    p_ref: (16, 128) packed weights/biases (VMEM-resident, constant block)
    o_ref: (OUT, TB) raw params (or sigmoid(raw) if apply_sigmoid), lane-dense
    """
    t = t_ref[...]                                     # (1, TB)
    P = p_ref[...]                                     # (16, 128)

    # ---- layer 1: Linear(1, H) + tanh  (K=1 outer product -> pure VPU/EUP) ----
    w1 = P[:, COL_W1:COL_W1 + 1]                       # (16, 1), rows >= H are 0
    b1 = P[:, COL_B1:COL_B1 + 1]                       # (16, 1)
    h = jnp.tanh(w1 * t + b1)                          # (16, TB); rows >= H are 0

    # ---- layer 2: Linear(H, H) + tanh  (unrolled VPU FMAs, K=HIDDEN) ----
    acc2 = P[:, COL_B2:COL_B2 + 1]                     # (16, 1)
    for k in range(HIDDEN):
        acc2 = acc2 + P[:, COL_W2 + k:COL_W2 + k + 1] * h[k:k + 1, :]
    h2 = jnp.tanh(acc2)                                # (16, TB)

    # ---- layer 3: Linear(H, OUT)  (8 sublanes only: one f32 sublane tile) ----
    acc3 = P[:OUT, COL_B3:COL_B3 + 1]                  # (8, 1)
    for k in range(HIDDEN):
        acc3 = acc3 + P[:OUT, COL_W3 + k:COL_W3 + k + 1] * h2[k:k + 1, :]
    # acc3: (8, TB)

    if apply_sigmoid:                                  # fused get_params epilogue
        acc3 = jax.nn.sigmoid(acc3)                    # exp + recip on the idle EUP

    o_ref[...] = acc3.astype(o_ref.dtype)


def _choose_tile(n):
    """Lane tile: multiple of 128, capped at TB_MAX=512 so the live vreg set
    stays <= ~32 (no spill). Single grid step whenever the batch fits; N > 512
    naturally yields >=2 'parallel' steps (both v7x TensorCores get work)."""
    return min(TB_MAX, pl.cdiv(n, 128) * 128)


@partial(jax.jit, static_argnames=("apply_sigmoid",))
def betanet_forward(t, params_packed, apply_sigmoid=False):
    """t: (N, 1) or (N,) float32. Returns (N, 8) float32:
    raw params (forward) or sigmoid(raw) (get_params) if apply_sigmoid."""
    n = t.shape[0]
    tile = _choose_tile(n)
    grid = (pl.cdiv(n, tile),)

    # Batch-on-lanes layout; NO explicit zero-pad — Pallas masks the partial
    # edge block (padded lanes hold garbage and are sliced off by shape (8, n)).
    t_row = t.reshape(1, n).astype(jnp.float32)

    out = pl.pallas_call(
        partial(betanet_kernel, apply_sigmoid=apply_sigmoid),
        out_shape=jax.ShapeDtypeStruct((OUT, n), jnp.float32),
        grid_spec=pltpu.PrefetchScalarGridSpec(
            num_scalar_prefetch=0,
            grid=grid,
            in_specs=[
                pl.BlockSpec((1, tile), lambda i: (0, i)),               # t tile
                pl.BlockSpec((PACK_ROWS, PACK_COLS), lambda i: (0, 0)),  # packed params
            ],
            out_specs=pl.BlockSpec((OUT, tile), lambda i: (0, i)),
        ),
        compiler_params=pltpu.CompilerParams(
            dimension_semantics=("parallel",)
        ),
    )(t_row, params_packed)

    # Back to PyTorch's (N, 8) convention. Single cheap XLA transpose; callers
    # that can consume feature-major (8, N) should take `out` directly.
    return out.T


def betanet_get_params(t, params_packed):
    """Equivalent of BetaNet.get_params: sigmoid fused into the kernel."""
    return betanet_forward(t, params_packed, apply_sigmoid=True)


def pack_params(w1, b1, w2, b2, w3, b3):
    """Pack torch-layout (out_features, in_features) weights + biases into one
    (16, 128) VMEM-friendly buffer. Unused entries MUST stay zero."""
    P = jnp.zeros((PACK_ROWS, PACK_COLS), jnp.float32)
    P = P.at[:HIDDEN, COL_W1].set(w1[:, 0])
    P = P.at[:HIDDEN, COL_B1].set(b1)
    P = P.at[:HIDDEN, COL_W2:COL_W2 + HIDDEN].set(w2)
    P = P.at[:HIDDEN, COL_B2].set(b2)
    P = P.at[:OUT, COL_W3:COL_W3 + HIDDEN].set(w3)
    P = P.at[:OUT, COL_B3].set(b3)
    return P


def init_params(key):
    """Xavier-normal init with tanh gain (5/3), zero biases.
    Weights kept in PyTorch nn.Linear layout: (out_features, in_features)."""
    gain = 5.0 / 3.0  # nn.init.calculate_gain('tanh')

    def xavier(k, fan_out, fan_in):
        std = gain * (2.0 / (fan_in + fan_out)) ** 0.5
        return (std * jax.random.normal(k, (fan_out, fan_in))).astype(jnp.float32)

    k1, k2, k3 = jax.random.split(key, 3)
    w1 = xavier(k1, HIDDEN, 1)
    b1 = jnp.zeros((HIDDEN,), jnp.float32)
    w2 = xavier(k2, HIDDEN, HIDDEN)
    b2 = jnp.zeros((HIDDEN,), jnp.float32)
    w3 = xavier(k3, OUT, HIDDEN)
    b3 = jnp.zeros((OUT,), jnp.float32)
    return w1, b1, w2, b2, w3, b3


def betanet_ref(t, w1, b1, w2, b2, w3, b3):
    """Pure-JAX reference matching the PyTorch module (x @ W.T + b)."""
    t2 = t.reshape(-1, 1).astype(jnp.float32)
    h = jnp.tanh(t2 @ w1.T + b1)
    h = jnp.tanh(h @ w2.T + b2)
    return h @ w3.T + b3


if __name__ == "__main__":
    key = jax.random.PRNGKey(0)
    w1, b1, w2, b2, w3, b3 = init_params(key)
    packed = pack_params(w1, b1, w2, b2, w3, b3)

    # Small deterministic time grid (same layout as the original script's (N,1)).
    N = 200
    t0, tf = 0.0, 1.0
    t = jnp.linspace(t0, tf, N, dtype=jnp.float32).reshape(N, 1)

    raw = jax.block_until_ready(betanet_forward(t, packed))           # forward()
    epi = jax.block_until_ready(betanet_get_params(t, packed))        # get_params()

    ref_raw = betanet_ref(t, w1, b1, w2, b2, w3, b3)
    assert raw.shape == (N, OUT)
    assert epi.shape == (N, OUT)
    assert jnp.allclose(raw, ref_raw, atol=2e-5, rtol=1e-4), "forward mismatch"
    assert jnp.allclose(epi, jax.nn.sigmoid(ref_raw), atol=2e-5, rtol=1e-4), \
        "get_params mismatch"

    print("KERNEL_OK")
</pallas_src>

<mosaic_0001>
module attributes {stable_mosaic.version = 11 : i64} {
  func.func @betanet_kernel(%arg0: i32, %arg1: memref<1x256xf32, #tpu.memory_space<vmem>>, %arg2: memref<16x128xf32, #tpu.memory_space<vmem>>, %arg3: memref<8x256xf32, #tpu.memory_space<vmem>>) attributes {dimension_semantics = [#tpu.dimension_semantics<parallel>], iteration_bounds = array<i64: 1>, scalar_prefetch = 0 : i64, scratch_operands = 0 : i64, tpu.core_type = #tpu.core_type<tc>, window_params = [{transform_indices = @transform_0, window_bounds = array<i64: 1, 256>}, {pipeline_mode = #tpu.pipeline_mode<synchronous>, transform_indices = @transform_1, window_bounds = array<i64: 16, 128>}, {transform_indices = @transform_2, window_bounds = array<i64: 8, 256>}]} {
    %c0 = arith.constant 0 : index
    %c0_0 = arith.constant 0 : index
    %0 = vector.load %arg1[%c0, %c0_0] : memref<1x256xf32, #tpu.memory_space<vmem>>, vector<1x256xf32>
    %c0_1 = arith.constant 0 : index
    %c0_2 = arith.constant 0 : index
    %1 = vector.load %arg2[%c0_1, %c0_2] : memref<16x128xf32, #tpu.memory_space<vmem>>, vector<16x128xf32>
    %2 = vector.extract_strided_slice %1 {offsets = [0, 0], sizes = [16, 1], strides = [1, 1]} : vector<16x128xf32> to vector<16x1xf32>
    %3 = vector.extract_strided_slice %1 {offsets = [0, 1], sizes = [16, 1], strides = [1, 1]} : vector<16x128xf32> to vector<16x1xf32>
    %4 = vector.broadcast %2 : vector<16x1xf32> to vector<16x256xf32>
    %5 = vector.broadcast %0 : vector<1x256xf32> to vector<16x256xf32>
    %6 = arith.mulf %4, %5 : vector<16x256xf32>
    %7 = vector.broadcast %3 : vector<16x1xf32> to vector<16x256xf32>
    %8 = arith.addf %6, %7 : vector<16x256xf32>
    %9 = math.tanh %8 : vector<16x256xf32>
    %10 = vector.extract_strided_slice %1 {offsets = [0, 12], sizes = [16, 1], strides = [1, 1]} : vector<16x128xf32> to vector<16x1xf32>
    %11 = vector.extract_strided_slice %1 {offsets = [0, 2], sizes = [16, 1], strides = [1, 1]} : vector<16x128xf32> to vector<16x1xf32>
    %12 = vector.extract_strided_slice %9 {offsets = [0, 0], sizes = [1, 256], strides = [1, 1]} : vector<16x256xf32> to vector<1x256xf32>
    %13 = vector.broadcast %11 : vector<16x1xf32> to vector<16x256xf32>
    %14 = vector.broadcast %12 : vector<1x256xf32> to vector<16x256xf32>
    %15 = arith.mulf %13, %14 : vector<16x256xf32>
    %16 = vector.broadcast %10 : vector<16x1xf32> to vector<16x256xf32>
    %17 = arith.addf %16, %15 : vector<16x256xf32>
    %18 = vector.extract_strided_slice %1 {offsets = [0, 3], sizes = [16, 1], strides = [1, 1]} : vector<16x128xf32> to vector<16x1xf32>
    %19 = vector.extract_strided_slice %9 {offsets = [1, 0], sizes = [1, 256], strides = [1, 1]} : vector<16x256xf32> to vector<1x256xf32>
    %20 = vector.broadcast %18 : vector<16x1xf32> to vector<16x256xf32>
    %21 = vector.broadcast %19 : vector<1x256xf32> to vector<16x256xf32>
    %22 = arith.mulf %20, %21 : vector<16x256xf32>
    %23 = arith.addf %17, %22 : vector<16x256xf32>
    %24 = vector.extract_strided_slice %1 {offsets = [0, 4], sizes = [16, 1], strides = [1, 1]} : vector<16x128xf32> to vector<16x1xf32>
    %25 = vector.extract_strided_slice %9 {offsets = [2, 0], sizes = [1, 256], strides = [1, 1]} : vector<16x256xf32> to vector<1x256xf32>
    %26 = vector.broadcast %24 : vector<16x1xf32> to vector<16x256xf32>
    %27 = vector.broadcast %25 : vector<1x256xf32> to vector<16x256xf32>
    %28 = arith.mulf %26, %27 : vector<16x256xf32>
    %29 = arith.addf %23, %28 : vector<16x256xf32>
    %30 = vector.extract_strided_slice %1 {offsets = [0, 5], sizes = [16, 1], strides = [1, 1]} : vector<16x128xf32> to vector<16x1xf32>
    %31 = vector.extract_strided_slice %9 {offsets = [3, 0], sizes = [1, 256], strides = [1, 1]} : vector<16x256xf32> to vector<1x256xf32>
    %32 = vector.broadcast %30 : vector<16x1xf32> to vector<16x256xf32>
    %33 = vector.broadcast %31 : vector<1x256xf32> to vector<16x256xf32>
    %34 = arith.mulf %32, %33 : vector<16x256xf32>
    %35 = arith.addf %29, %34 : vector<16x256xf32>
    %36 = vector.extract_strided_slice %1 {offsets = [0, 6], sizes = [16, 1], strides = [1, 1]} : vector<16x128xf32> to vector<16x1xf32>
    %37 = vector.extract_strided_slice %9 {offsets = [4, 0], sizes = [1, 256], strides = [1, 1]} : vector<16x256xf32> to vector<1x256xf32>
    %38 = vector.broadcast %36 : vector<16x1xf32> to vector<16x256xf32>
    %39 = vector.broadcast %37 : vector<1x256xf32> to vector<16x256xf32>
    %40 = arith.mulf %38, %39 : vector<16x256xf32>
    %41 = arith.addf %35, %40 : vector<16x256xf32>
    %42 = vector.extract_strided_slice %1 {offsets = [0, 7], sizes = [16, 1], strides = [1, 1]} : vector<16x128xf32> to vector<16x1xf32>
    %43 = vector.extract_strided_slice %9 {offsets = [5, 0], sizes = [1, 256], strides = [1, 1]} : vector<16x256xf32> to vector<1x256xf32>
    %44 = vector.broadcast %42 : vector<16x1xf32> to vector<16x256xf32>
    %45 = vector.broadcast %43 : vector<1x256xf32> to vector<16x256xf32>
    %46 = arith.mulf %44, %45 : vector<16x256xf32>
    %47 = arith.addf %41, %46 : vector<16x256xf32>
    %48 = vector.extract_strided_slice %1 {offsets = [0, 8], sizes = [16, 1], strides = [1, 1]} : vector<16x128xf32> to vector<16x1xf32>
    %49 = vector.extract_strided_slice %9 {offsets = [6, 0], sizes = [1, 256], strides = [1, 1]} : vector<16x256xf32> to vector<1x256xf32>
    %50 = vector.broadcast %48 : vector<16x1xf32> to vector<16x256xf32>
    %51 = vector.broadcast %49 : vector<1x256xf32> to vector<16x256xf32>
    %52 = arith.mulf %50, %51 : vector<16x256xf32>
    %53 = arith.addf %47, %52 : vector<16x256xf32>
    %54 = vector.extract_strided_slice %1 {offsets = [0, 9], sizes = [16, 1], strides = [1, 1]} : vector<16x128xf32> to vector<16x1xf32>
    %55 = vector.extract_strided_slice %9 {offsets = [7, 0], sizes = [1, 256], strides = [1, 1]} : vector<16x256xf32> to vector<1x256xf32>
    %56 = vector.broadcast %54 : vector<16x1xf32> to vector<16x256xf32>
    %57 = vector.broadcast %55 : vector<1x256xf32> to vector<16x256xf32>
    %58 = arith.mulf %56, %57 : vector<16x256xf32>
    %59 = arith.addf %53, %58 : vector<16x256xf32>
    %60 = vector.extract_strided_slice %1 {offsets = [0, 10], sizes = [16, 1], strides = [1, 1]} : vector<16x128xf32> to vector<16x1xf32>
    %61 = vector.extract_strided_slice %9 {offsets = [8, 0], sizes = [1, 256], strides = [1, 1]} : vector<16x256xf32> to vector<1x256xf32>
    %62 = vector.broadcast %60 : vector<16x1xf32> to vector<16x256xf32>
    %63 = vector.broadcast %61 : vector<1x256xf32> to vector<16x256xf32>
    %64 = arith.mulf %62, %63 : vector<16x256xf32>
    %65 = arith.addf %59, %64 : vector<16x256xf32>
    %66 = vector.extract_strided_slice %1 {offsets = [0, 11], sizes = [16, 1], strides = [1, 1]} : vector<16x128xf32> to vector<16x1xf32>
    %67 = vector.extract_strided_slice %9 {offsets = [9, 0], sizes = [1, 256], strides = [1, 1]} : vector<16x256xf32> to vector<1x256xf32>
    %68 = vector.broadcast %66 : vector<16x1xf32> to vector<16x256xf32>
    %69 = vector.broadcast %67 : vector<1x256xf32> to vector<16x256xf32>
    %70 = arith.mulf %68, %69 : vector<16x256xf32>
    %71 = arith.addf %65, %70 : vector<16x256xf32>
    %72 = math.tanh %71 : vector<16x256xf32>
    %73 = vector.extract_strided_slice %1 {offsets = [0, 23], sizes = [8, 1], strides = [1, 1]} : vector<16x128xf32> to vector<8x1xf32>
    %74 = vector.extract_strided_slice %1 {offsets = [0, 13], sizes = [8, 1], strides = [1, 1]} : vector<16x128xf32> to vector<8x1xf32>
    %75 = vector.extract_strided_slice %72 {offsets = [0, 0], sizes = [1, 256], strides = [1, 1]} : vector<16x256xf32> to vector<1x256xf32>
    %76 = vector.broadcast %74 : vector<8x1xf32> to vector<8x256xf32>
    %77 = vector.broadcast %75 : vector<1x256xf32> to vector<8x256xf32>
    %78 = arith.mulf %76, %77 : vector<8x256xf32>
    %79 = vector.broadcast %73 : vector<8x1xf32> to vector<8x256xf32>
    %80 = arith.addf %79, %78 : vector<8x256xf32>
    %81 = vector.extract_strided_slice %1 {offsets = [0, 14], sizes = [8, 1], strides = [1, 1]} : vector<16x128xf32> to vector<8x1xf32>
    %82 = vector.extract_strided_slice %72 {offsets = [1, 0], sizes = [1, 256], strides = [1, 1]} : vector<16x256xf32> to vector<1x256xf32>
    %83 = vector.broadcast %81 : vector<8x1xf32> to vector<8x256xf32>
    %84 = vector.broadcast %82 : vector<1x256xf32> to vector<8x256xf32>
    %85 = arith.mulf %83, %84 : vector<8x256xf32>
    %86 = arith.addf %80, %85 : vector<8x256xf32>
    %87 = vector.extract_strided_slice %1 {offsets = [0, 15], sizes = [8, 1], strides = [1, 1]} : vector<16x128xf32> to vector<8x1xf32>
    %88 = vector.extract_strided_slice %72 {offsets = [2, 0], sizes = [1, 256], strides = [1, 1]} : vector<16x256xf32> to vector<1x256xf32>
    %89 = vector.broadcast %87 : vector<8x1xf32> to vector<8x256xf32>
    %90 = vector.broadcast %88 : vector<1x256xf32> to vector<8x256xf32>
    %91 = arith.mulf %89, %90 : vector<8x256xf32>
    %92 = arith.addf %86, %91 : vector<8x256xf32>
    %93 = vector.extract_strided_slice %1 {offsets = [0, 16], sizes = [8, 1], strides = [1, 1]} : vector<16x128xf32> to vector<8x1xf32>
    %94 = vector.extract_strided_slice %72 {offsets = [3, 0], sizes = [1, 256], strides = [1, 1]} : vector<16x256xf32> to vector<1x256xf32>
    %95 = vector.broadcast %93 : vector<8x1xf32> to vector<8x256xf32>
    %96 = vector.broadcast %94 : vector<1x256xf32> to vector<8x256xf32>
    %97 = arith.mulf %95, %96 : vector<8x256xf32>
    %98 = arith.addf %92, %97 : vector<8x256xf32>
    %99 = vector.extract_strided_slice %1 {offsets = [0, 17], sizes = [8, 1], strides = [1, 1]} : vector<16x128xf32> to vector<8x1xf32>
    %100 = vector.extract_strided_slice %72 {offsets = [4, 0], sizes = [1, 256], strides = [1, 1]} : vector<16x256xf32> to vector<1x256xf32>
    %101 = vector.broadcast %99 : vector<8x1xf32> to vector<8x256xf32>
    %102 = vector.broadcast %100 : vector<1x256xf32> to vector<8x256xf32>
    %103 = arith.mulf %101, %102 : vector<8x256xf32>
    %104 = arith.addf %98, %103 : vector<8x256xf32>
    %105 = vector.extract_strided_slice %1 {offsets = [0, 18], sizes = [8, 1], strides = [1, 1]} : vector<16x128xf32> to vector<8x1xf32>
    %106 = vector.extract_strided_slice %72 {offsets = [5, 0], sizes = [1, 256], strides = [1, 1]} : vector<16x256xf32> to vector<1x256xf32>
    %107 = vector.broadcast %105 : vector<8x1xf32> to vector<8x256xf32>
    %108 = vector.broadcast %106 : vector<1x256xf32> to vector<8x256xf32>
    %109 = arith.mulf %107, %108 : vector<8x256xf32>
    %110 = arith.addf %104, %109 : vector<8x256xf32>
    %111 = vector.extract_strided_slice %1 {offsets = [0, 19], sizes = [8, 1], strides = [1, 1]} : vector<16x128xf32> to vector<8x1xf32>
    %112 = vector.extract_strided_slice %72 {offsets = [6, 0], sizes = [1, 256], strides = [1, 1]} : vector<16x256xf32> to vector<1x256xf32>
    %113 = vector.broadcast %111 : vector<8x1xf32> to vector<8x256xf32>
    %114 = vector.broadcast %112 : vector<1x256xf32> to vector<8x256xf32>
    %115 = arith.mulf %113, %114 : vector<8x256xf32>
    %116 = arith.addf %110, %115 : vector<8x256xf32>
    %117 = vector.extract_strided_slice %1 {offsets = [0, 20], sizes = [8, 1], strides = [1, 1]} : vector<16x128xf32> to vector<8x1xf32>
    %118 = vector.extract_strided_slice %72 {offsets = [7, 0], sizes = [1, 256], strides = [1, 1]} : vector<16x256xf32> to vector<1x256xf32>
    %119 = vector.broadcast %117 : vector<8x1xf32> to vector<8x256xf32>
    %120 = vector.broadcast %118 : vector<1x256xf32> to vector<8x256xf32>
    %121 = arith.mulf %119, %120 : vector<8x256xf32>
    %122 = arith.addf %116, %121 : vector<8x256xf32>
    %123 = vector.extract_strided_slice %1 {offsets = [0, 21], sizes = [8, 1], strides = [1, 1]} : vector<16x128xf32> to vector<8x1xf32>
    %124 = vector.extract_strided_slice %72 {offsets = [8, 0], sizes = [1, 256], strides = [1, 1]} : vector<16x256xf32> to vector<1x256xf32>
    %125 = vector.broadcast %123 : vector<8x1xf32> to vector<8x256xf32>
    %126 = vector.broadcast %124 : vector<1x256xf32> to vector<8x256xf32>
    %127 = arith.mulf %125, %126 : vector<8x256xf32>
    %128 = arith.addf %122, %127 : vector<8x256xf32>
    %129 = vector.extract_strided_slice %1 {offsets = [0, 22], sizes = [8, 1], strides = [1, 1]} : vector<16x128xf32> to vector<8x1xf32>
    %130 = vector.extract_strided_slice %72 {offsets = [9, 0], sizes = [1, 256], strides = [1, 1]} : vector<16x256xf32> to vector<1x256xf32>
    %131 = vector.broadcast %129 : vector<8x1xf32> to vector<8x256xf32>
    %132 = vector.broadcast %130 : vector<1x256xf32> to vector<8x256xf32>
    %133 = arith.mulf %131, %132 : vector<8x256xf32>
    %134 = arith.addf %128, %133 : vector<8x256xf32>
    %c0_3 = arith.constant 0 : index
    %c0_4 = arith.constant 0 : index
    %135 = vector.load %arg3[%c0_3, %c0_4] : memref<8x256xf32, #tpu.memory_space<vmem>>, vector<8x256xf32>
    tpu.vector_store %arg3[%c0_3, %c0_4], %134 {strides = array<i32>} : memref<8x256xf32, #tpu.memory_space<vmem>>, vector<8x256xf32>,
    return
  }
  func.func @transform_0(%arg0: i32) -> (i32, i32) {
    %c0_i32 = arith.constant 0 : i32
    %c0_i32_0 = arith.constant 0 : i32
    return %c0_i32, %arg0 : i32, i32
  }
  func.func @transform_1(%arg0: i32) -> (i32, i32) {
    %c0_i32 = arith.constant 0 : i32
    %c0_i32_0 = arith.constant 0 : i32
    %c0_i32_1 = arith.constant 0 : i32
    return %c0_i32, %c0_i32_0 : i32, i32
  }
  func.func @transform_2(%arg0: i32) -> (i32, i32) {
    %c0_i32 = arith.constant 0 : i32
    %c0_i32_0 = arith.constant 0 : i32
    return %c0_i32, %arg0 : i32, i32
  }
}

</mosaic_0001>

<llo_original>
// kernel: betanet_forward.1
$region0: #{betanet_forward.1}
  #allocation0 [shape = 'u32[]', space=smem, size = 0x4, offset = 0x4, fixed_abs, tag = 'smem constant byte address 0x4 - core index']
  #allocation1 [shape = 'u32[72,128]{1,0:T(1,128)}', space=vmem, size = 0x9000, scoped, tag = 'internal scratch']
  %s0 = inlined_call_operand.hbm [shape: f32[1,200], index: 0, kind: input, shape index: {}]
  %s1 = inlined_call_operand.hbm [shape: f32[16,128], index: 1, kind: input, shape index: {}]
  %s2 = inlined_call_operand.hbm [shape: f32[8,200], index: 2, kind: output, shape index: {}]
  %s3 = sld [smem:[#allocation0]]
  $region26: #{betanet_forward.1} parent=0
    _
  %s5 = ssub.s32 1, %s3
  %s6 = scalar_select 0, %s5, %s3
  $region1: #{betanet_forward.1} parent=0
    #allocation2 [shape = 'u8[1024]{0}', space=vmem, size = 0x400, scoped, tag = 'input window, operand 0, single buffered']
    #allocation3 [shape = 's32[1]{0}', space=sflag, size = 0x4, scoped, tag = 'scoped memory for betanet_forward.1']
    #allocation4 [shape = 's32[1]{0}', space=sflag, size = 0x4, scoped, tag = 'scoped memory for betanet_forward.1']
    #allocation5 [shape = 'u8[8192]{0}', space=vmem, size = 0x2000, scoped, tag = 'input window, operand 1, single buffered']
    #allocation6 [shape = 's32[1]{0}', space=sflag, size = 0x4, scoped, tag = 'scoped memory for betanet_forward.1']
    #allocation7 [shape = 'u8[8192]{0}', space=vmem, size = 0x2000, scoped, tag = 'output window, operand 0, single buffered']
    %7 = vsyncpa [#allocation3], 0
    %8 = vsyncpa [#allocation6], 0
    %9 = vsyncpa [#allocation4], 0
    // Predicated region
    $region2: #{betanet_forward.1} parent=1 // pred_check
      _
    $region3: #{betanet_forward.1} parent=1 // pred_check_branch
      %11 = sbr.rel (0) target = $region5
    $region4: #{betanet_forward.1} parent=1 // pred_region
      %13 = vsyncadd [#allocation3], 0
      %s15 = sshll.u32 %s0, 4
      %s16 = int_to_ptr.hbm [resolvable:$true] %s15
      %s17 = sshll.u32 [#allocation2], 4
      %s18 = int_to_ptr.vmem [resolvable:$true] %s17
      %20 = dma.hbm_to_vmem [thread:$0]  %s16, 32, %s18, [#allocation3]
    $region5: #{betanet_forward.1} parent=1 // pred_fallthru
      _
    // Predicated region
    $region6: #{betanet_forward.1} parent=1 // pred_check
      _
    $region7: #{betanet_forward.1} parent=1 // pred_check_branch
      %22 = sbr.rel (0) target = $region9
    $region8: #{betanet_forward.1} parent=1 // pred_region
      %24 = vsyncadd [#allocation6], 0
      %s25 = sshll.u32 %s1, 4
      %s26 = int_to_ptr.hbm [resolvable:$true] %s25
      %s27 = sshll.u32 [#allocation5], 4
      %s28 = int_to_ptr.vmem [resolvable:$true] %s27
      %33 = dma.hbm_to_vmem [thread:$0]  %s26, 256, %s28, [#allocation6], 128, 128, 8
    $region9: #{betanet_forward.1} parent=1 // pred_fallthru
      _
    // Predicated region
    $region10: #{betanet_forward.1} parent=1 // pred_check
      _
    $region11: #{betanet_forward.1} parent=1 // pred_check_branch
      %35 = sbr.rel (0) target = $region13
    $region12: #{betanet_forward.1} parent=1 // pred_region
      %37 = dma.done [#allocation3], 32
    $region13: #{betanet_forward.1} parent=1 // pred_fallthru
      _
    // Predicated region
    $region14: #{betanet_forward.1} parent=1 // pred_check
      _
    $region15: #{betanet_forward.1} parent=1 // pred_check_branch
      %39 = sbr.rel (0) target = $region17
    $region16: #{betanet_forward.1} parent=1 // pred_region
      %41 = dma.done [#allocation6], 256
    $region17: #{betanet_forward.1} parent=1 // pred_fallthru
      _
    %v42 = vld [vmem:[#allocation2] sm:$0x3]
    %v43 = vld [vmem:[#allocation5] sm:$0xff]
    %v44 = vld [vmem:[#allocation5 + $0x8] sm:$0xff]
    %46 = vset.pattern.permute.xlu0 0
    %47 = vperm.xlu0 %46, %v43
    %v48 = vpop.permute.xlu0 %47
    %51 = vset.pattern.permute.xlu0 0
    %52 = vperm.xlu0 %51, %v44
    %v53 = vpop.permute.xlu0 %52
    %v56 = vperm.slane %v42, 0
    %v57 = vperm.slane %v42, 1
    %v60 = vmul.f32 %v48, %v56
    %v61 = vmul.f32 %v48, %v57
    %v62 = vmul.f32 %v53, %v56
    %v63 = vmul.f32 %v53, %v57
    %64 = vset.pattern.permute.xlu0 1
    %65 = vperm.xlu0 %64, %v43
    %v66 = vpop.permute.xlu0 %65
    %68 = vset.pattern.permute.xlu0 1
    %69 = vperm.xlu0 %68, %v44
    %v70 = vpop.permute.xlu0 %69
    %v72 = vadd.f32 %v60, %v66
    %v73 = vadd.f32 %v61, %v66
    %v74 = vadd.f32 %v62, %v70
    %v75 = vadd.f32 %v63, %v70
    %v76 = vtanh.pop %v72
    %v77 = vtanh.pop %v73
    %v78 = vtanh.pop %v74
    %v79 = vtanh.pop %v75
    %80 = vset.pattern.permute.xlu0 2
    %81 = vperm.xlu0 %80, %v43
    %v82 = vpop.permute.xlu0 %81
    %84 = vset.pattern.permute.xlu0 2
    %85 = vperm.xlu0 %84, %v44
    %v86 = vpop.permute.xlu0 %85
    %v88 = vperm.slane %v76, 0
    %v89 = vperm.slane %v77, 0
    %v90 = vmul.f32 %v82, %v88
    %v91 = vmul.f32 %v82, %v89
    %v92 = vmul.f32 %v86, %v88
    %v93 = vmul.f32 %v86, %v89
    %94 = vset.pattern.permute.xlu0 12
    %95 = vperm.xlu0 %94, %v43
    %v96 = vpop.permute.xlu0 %95
    %98 = vset.pattern.permute.xlu0 12
    %99 = vperm.xlu0 %98, %v44
    %v100 = vpop.permute.xlu0 %99
    %v102 = vadd.f32 %v96, %v90
    %v103 = vadd.f32 %v96, %v91
    %v104 = vadd.f32 %v100, %v92
    %v105 = vadd.f32 %v100, %v93
    %106 = vset.pattern.permute.xlu0 3
    %107 = vperm.xlu0 %106, %v43
    %v108 = vpop.permute.xlu0 %107
    %110 = vset.pattern.permute.xlu0 3
    %111 = vperm.xlu0 %110, %v44
    %v112 = vpop.permute.xlu0 %111
    %v114 = vperm.slane %v76, 1
    %v115 = vperm.slane %v77, 1
    %v116 = vmul.f32 %v108, %v114
    %v117 = vmul.f32 %v108, %v115
    %v118 = vmul.f32 %v112, %v114
    %v119 = vmul.f32 %v112, %v115
    %v120 = vadd.f32 %v102, %v116
    %v121 = vadd.f32 %v103, %v117
    %v122 = vadd.f32 %v104, %v118
    %v123 = vadd.f32 %v105, %v119
    %124 = vset.pattern.permute.xlu0 4
    %125 = vperm.xlu0 %124, %v43
    %v126 = vpop.permute.xlu0 %125
    %128 = vset.pattern.permute.xlu0 4
    %129 = vperm.xlu0 %128, %v44
    %v130 = vpop.permute.xlu0 %129
    %v132 = vperm.slane %v76, 2
    %v133 = vperm.slane %v77, 2
    %v134 = vmul.f32 %v126, %v132
    %v135 = vmul.f32 %v126, %v133
    %v136 = vmul.f32 %v130, %v132
    %v137 = vmul.f32 %v130, %v133
    %v138 = vadd.f32 %v120, %v134
    %v139 = vadd.f32 %v121, %v135
    %v140 = vadd.f32 %v122, %v136
    %v141 = vadd.f32 %v123, %v137
    %142 = vset.pattern.permute.xlu0 5
    %143 = vperm.xlu0 %142, %v43
    %v144 = vpop.permute.xlu0 %143
    %146 = vset.pattern.permute.xlu0 5
    %147 = vperm.xlu0 %146, %v44
    %v148 = vpop.permute.xlu0 %147
    %v150 = vperm.slane %v76, 3
    %v151 = vperm.slane %v77, 3
    %v152 = vmul.f32 %v144, %v150
    %v153 = vmul.f32 %v144, %v151
    %v154 = vmul.f32 %v148, %v150
    %v155 = vmul.f32 %v148, %v151
    %v156 = vadd.f32 %v138, %v152
    %v157 = vadd.f32 %v139, %v153
    %v158 = vadd.f32 %v140, %v154
    %v159 = vadd.f32 %v141, %v155
    %160 = vset.pattern.permute.xlu0 6
    %161 = vperm.xlu0 %160, %v43
    %v162 = vpop.permute.xlu0 %161
    %164 = vset.pattern.permute.xlu0 6
    %165 = vperm.xlu0 %164, %v44
    %v166 = vpop.permute.xlu0 %165
    %v168 = vperm.slane %v76, 4
    %v169 = vperm.slane %v77, 4
    %v170 = vmul.f32 %v162, %v168
    %v171 = vmul.f32 %v162, %v169
    %v172 = vmul.f32 %v166, %v168
    %v173 = vmul.f32 %v166, %v169
    %v174 = vadd.f32 %v156, %v170
    %v175 = vadd.f32 %v157, %v171
    %v176 = vadd.f32 %v158, %v172
    %v177 = vadd.f32 %v159, %v173
    %178 = vset.pattern.permute.xlu0 7
    %179 = vperm.xlu0 %178, %v43
    %v180 = vpop.permute.xlu0 %179
    %182 = vset.pattern.permute.xlu0 7
    %183 = vperm.xlu0 %182, %v44
    %v184 = vpop.permute.xlu0 %183
    %v186 = vperm.slane %v76, 5
    %v187 = vperm.slane %v77, 5
    %v188 = vmul.f32 %v180, %v186
    %v189 = vmul.f32 %v180, %v187
    %v190 = vmul.f32 %v184, %v186
    %v191 = vmul.f32 %v184, %v187
    %v192 = vadd.f32 %v174, %v188
    %v193 = vadd.f32 %v175, %v189
    %v194 = vadd.f32 %v176, %v190
    %v195 = vadd.f32 %v177, %v191
    %196 = vset.pattern.permute.xlu0 8
    %197 = vperm.xlu0 %196, %v43
    %v198 = vpop.permute.xlu0 %197
    %200 = vset.pattern.permute.xlu0 8
    %201 = vperm.xlu0 %200, %v44
    %v202 = vpop.permute.xlu0 %201
    %v204 = vperm.slane %v76, 6
    %v205 = vperm.slane %v77, 6
    %v206 = vmul.f32 %v198, %v204
    %v207 = vmul.f32 %v198, %v205
    %v208 = vmul.f32 %v202, %v204
    %v209 = vmul.f32 %v202, %v205
    %v210 = vadd.f32 %v192, %v206
    %v211 = vadd.f32 %v193, %v207
    %v212 = vadd.f32 %v194, %v208
    %v213 = vadd.f32 %v195, %v209
    %214 = vset.pattern.permute.xlu0 9
    %215 = vperm.xlu0 %214, %v43
    %v216 = vpop.permute.xlu0 %215
    %218 = vset.pattern.permute.xlu0 9
    %219 = vperm.xlu0 %218, %v44
    %v220 = vpop.permute.xlu0 %219
    %v222 = vperm.slane %v76, 7
    %v223 = vperm.slane %v77, 7
    %v224 = vmul.f32 %v216, %v222
    %v225 = vmul.f32 %v216, %v223
    %v226 = vmul.f32 %v220, %v222
    %v227 = vmul.f32 %v220, %v223
    %v228 = vadd.f32 %v210, %v224
    %v229 = vadd.f32 %v211, %v225
    %v230 = vadd.f32 %v212, %v226
    %v231 = vadd.f32 %v213, %v227
    %232 = vset.pattern.permute.xlu0 10
    %233 = vperm.xlu0 %232, %v43
    %v234 = vpop.permute.xlu0 %233
    %236 = vset.pattern.permute.xlu0 10
    %237 = vperm.xlu0 %236, %v44
    %v238 = vpop.permute.xlu0 %237
    %v240 = vperm.slane %v78, 0
    %v241 = vperm.slane %v79, 0
    %v242 = vmul.f32 %v234, %v240
    %v243 = vmul.f32 %v234, %v241
    %v244 = vmul.f32 %v238, %v240
    %v245 = vmul.f32 %v238, %v241
    %v246 = vadd.f32 %v228, %v242
    %v247 = vadd.f32 %v229, %v243
    %v248 = vadd.f32 %v230, %v244
    %v249 = vadd.f32 %v231, %v245
    %250 = vset.pattern.permute.xlu0 11
    %251 = vperm.xlu0 %250, %v43
    %v252 = vpop.permute.xlu0 %251
    %254 = vset.pattern.permute.xlu0 11
    %255 = vperm.xlu0 %254, %v44
    %v256 = vpop.permute.xlu0 %255
    %v258 = vperm.slane %v78, 1
    %v259 = vperm.slane %v79, 1
    %v260 = vmul.f32 %v252, %v258
    %v261 = vmul.f32 %v252, %v259
    %v262 = vmul.f32 %v256, %v258
    %v263 = vmul.f32 %v256, %v259
    %v264 = vadd.f32 %v246, %v260
    %v265 = vadd.f32 %v247, %v261
    %v266 = vadd.f32 %v248, %v262
    %v267 = vadd.f32 %v249, %v263
    %v268 = vtanh.pop %v264
    %v269 = vtanh.pop %v265
    %v270 = vtanh.pop %v266
    %v271 = vtanh.pop %v267
    %272 = vset.pattern.permute.xlu0 13
    %273 = vperm.xlu0 %272, %v43
    %v274 = vpop.permute.xlu0 %273
    %v276 = vperm.slane %v268, 0
    %v277 = vperm.slane %v269, 0
    %v278 = vmul.f32 %v274, %v276
    %v279 = vmul.f32 %v274, %v277
    %280 = vset.pattern.permute.xlu0 23
    %281 = vperm.xlu0 %280, %v43
    %v282 = vpop.permute.xlu0 %281
    %v284 = vadd.f32 %v282, %v278
    %v285 = vadd.f32 %v282, %v279
    %286 = vset.pattern.permute.xlu0 14
    %287 = vperm.xlu0 %286, %v43
    %v288 = vpop.permute.xlu0 %287
    %v290 = vperm.slane %v268, 1
    %v291 = vperm.slane %v269, 1
    %v292 = vmul.f32 %v288, %v290
    %v293 = vmul.f32 %v288, %v291
    %v294 = vadd.f32 %v284, %v292
    %v295 = vadd.f32 %v285, %v293
    %296 = vset.pattern.permute.xlu0 15
    %297 = vperm.xlu0 %296, %v43
    %v298 = vpop.permute.xlu0 %297
    %v300 = vperm.slane %v268, 2
    %v301 = vperm.slane %v269, 2
    %v302 = vmul.f32 %v298, %v300
    %v303 = vmul.f32 %v298, %v301
    %v304 = vadd.f32 %v294, %v302
    %v305 = vadd.f32 %v295, %v303
    %306 = vset.pattern.permute.xlu0 16
    %307 = vperm.xlu0 %306, %v43
    %v308 = vpop.permute.xlu0 %307
    %v310 = vperm.slane %v268, 3
    %v311 = vperm.slane %v269, 3
    %v312 = vmul.f32 %v308, %v310
    %v313 = vmul.f32 %v308, %v311
    %v314 = vadd.f32 %v304, %v312
    %v315 = vadd.f32 %v305, %v313
    %316 = vset.pattern.permute.xlu0 17
    %317 = vperm.xlu0 %316, %v43
    %v318 = vpop.permute.xlu0 %317
    %v320 = vperm.slane %v268, 4
    %v321 = vperm.slane %v269, 4
    %v322 = vmul.f32 %v318, %v320
    %v323 = vmul.f32 %v318, %v321
    %v324 = vadd.f32 %v314, %v322
    %v325 = vadd.f32 %v315, %v323
    %326 = vset.pattern.permute.xlu0 18
    %327 = vperm.xlu0 %326, %v43
    %v328 = vpop.permute.xlu0 %327
    %v330 = vperm.slane %v268, 5
    %v331 = vperm.slane %v269, 5
    %v332 = vmul.f32 %v328, %v330
    %v333 = vmul.f32 %v328, %v331
    %v334 = vadd.f32 %v324, %v332
    %v335 = vadd.f32 %v325, %v333
    %336 = vset.pattern.permute.xlu0 19
    %337 = vperm.xlu0 %336, %v43
    %v338 = vpop.permute.xlu0 %337
    %v340 = vperm.slane %v268, 6
    %v341 = vperm.slane %v269, 6
    %v342 = vmul.f32 %v338, %v340
    %v343 = vmul.f32 %v338, %v341
    %v344 = vadd.f32 %v334, %v342
    %v345 = vadd.f32 %v335, %v343
    %346 = vset.pattern.permute.xlu0 20
    %347 = vperm.xlu0 %346, %v43
    %v348 = vpop.permute.xlu0 %347
    %v350 = vperm.slane %v268, 7
    %v351 = vperm.slane %v269, 7
    %v352 = vmul.f32 %v348, %v350
    %v353 = vmul.f32 %v348, %v351
    %v354 = vadd.f32 %v344, %v352
    %v355 = vadd.f32 %v345, %v353
    %356 = vset.pattern.permute.xlu0 21
    %357 = vperm.xlu0 %356, %v43
    %v358 = vpop.permute.xlu0 %357
    %v360 = vperm.slane %v270, 0
    %v361 = vperm.slane %v271, 0
    %v362 = vmul.f32 %v358, %v360
    %v363 = vmul.f32 %v358, %v361
    %v364 = vadd.f32 %v354, %v362
    %v365 = vadd.f32 %v355, %v363
    %366 = vset.pattern.permute.xlu0 22
    %367 = vperm.xlu0 %366, %v43
    %v368 = vpop.permute.xlu0 %367
    %v370 = vperm.slane %v270, 1
    %v371 = vperm.slane %v271, 1
    %v372 = vmul.f32 %v368, %v370
    %v373 = vmul.f32 %v368, %v371
    %v374 = vadd.f32 %v364, %v372
    %v375 = vadd.f32 %v365, %v373
    %376 = vst [vmem:[#allocation7] sm:$0xff] %v374
    %377 = vst [vmem:[#allocation7 + $0x8] sm:$0xff] %v375
    // Predicated region
    $region18: #{betanet_forward.1} parent=1 // pred_check
      _
    $region19: #{betanet_forward.1} parent=1 // pred_check_branch
      %379 = sbr.rel (0) target = $region21
    $region20: #{betanet_forward.1} parent=1 // pred_region
      %381 = vsyncadd [#allocation4], 0
      %s383 = sshll.u32 [#allocation7], 4
      %s384 = int_to_ptr.vmem [resolvable:$true] %s383
      %s385 = sshll.u32 %s2, 4
      %s386 = int_to_ptr.hbm [resolvable:$true] %s385
      %388 = dma.vmem_to_hbm [thread:$0]  %s384, 256, %s386, [#allocation4]
    $region21: #{betanet_forward.1} parent=1 // pred_fallthru
      _
    // Predicated region
    $region22: #{betanet_forward.1} parent=1 // pred_check
      _
    $region23: #{betanet_forward.1} parent=1 // pred_check_branch
      %390 = sbr.rel (0) target = $region25
    $region24: #{betanet_forward.1} parent=1 // pred_region
      %392 = dma.done [#allocation4], 256
    $region25: #{betanet_forward.1} parent=1 // pred_fallthru
      _
    %393 = vsyncpa [#allocation3], 1
    %394 = vsyncpa [#allocation6], 1
    %395 = vsyncpa [#allocation4], 1

</llo_original>
